<compile_context>
chip_gen: v7x
topology: tpu7x:2x2x1
jax: 0.10.0
libtpu: 0.0.40
codegen_flags: <defaults>
</compile_context>

<pallas_src>
import math

import jax
import jax.numpy as jnp
from jax.experimental import pallas as pl
from jax.experimental.pallas import tpu as pltpu


def _add_pos_kernel(x_ref, pos_ref, o_ref):
    # x_ref: (tile_m, tile_l); pos_ref: (1, tile_l) sublane-broadcast.  The add
    # happens in the promoted dtype; o_ref carries that dtype so astype is free.
    o_ref[...] = (x_ref[...] + pos_ref[...]).astype(o_ref.dtype)
    # TODO(synk): dropout is skipped (module built with dropout=0.0 / eval mode);
    # training dropout would need pltpu.prng_seed + pltpu.prng_random_bits masking.


def _round_up(x, m):
    return (x + m - 1) // m * m


def positional_embedding(x, pos_embedding, *, target_tile_bytes=4 * 1024 * 1024):
    """x: (batch, channels, embedding_size); pos_embedding: (1, channels, embedding_size)."""
    B, C, E = x.shape
    assert pos_embedding.shape == (1, C, E)
    CE = C * E
    out_dtype = jnp.promote_types(x.dtype, pos_embedding.dtype)

    # ---- lane-dense 2-D layout ------------------------------------------------
    # Fold k consecutive samples onto the lane axis when CE is not 128-aligned
    # and the batch allows it, so the output lane width is a multiple of 128.
    k = 1
    if CE % 128 != 0:
        fold = 128 // math.gcd(CE, 128)
        if fold > 1 and B % fold == 0:
            k = fold
    M_rows = B // k
    L_total = CE * k

    x2 = x.reshape(M_rows, L_total)
    pos_row = pos_embedding.reshape(1, CE)
    if k > 1:
        pos_row = jnp.tile(pos_row, (1, k))          # tiny one-time cost

    in_itemsize = x2.dtype.itemsize
    out_itemsize = jnp.dtype(out_dtype).itemsize
    sub = 32 // min(in_itemsize, out_itemsize)        # sublane packing: 8/16/32

    # ---- byte-targeted tile selection ------------------------------------------
    bytes_per_row = L_total * in_itemsize
    if M_rows <= sub:
        tile_m = M_rows                               # full dim (always legal)
    elif bytes_per_row * sub > target_tile_bytes:
        tile_m = sub                                  # huge rows: lane-tile below
    else:
        rows = (target_tile_bytes // bytes_per_row) // sub * sub
        tile_m = min(M_rows, max(sub, rows))

    if L_total % 128 == 0 and tile_m * bytes_per_row > target_tile_bytes:
        lanes = (target_tile_bytes // max(tile_m * in_itemsize, 1)) // 128 * 128
        tile_l = min(L_total, max(128, lanes))
    else:
        tile_l = L_total                              # full lane dim (always legal)

    # ---- keep >= 2 grid programs when possible (v7x: 2 TCs share HBM BW) -------
    grid_m = pl.cdiv(M_rows, tile_m)
    grid_l = pl.cdiv(L_total, tile_l)
    if grid_m * grid_l < 2:
        if M_rows > sub:
            tile_m = min(M_rows, _round_up(pl.cdiv(M_rows, 2), sub))
            grid_m = pl.cdiv(M_rows, tile_m)
        elif L_total % 128 == 0 and L_total >= 256:
            tile_l = min(L_total, _round_up(pl.cdiv(L_total, 2), 128))
            grid_l = pl.cdiv(L_total, tile_l)
    grid = (grid_m, grid_l)

    cost = pl.CostEstimate(
        flops=M_rows * L_total,
        bytes_accessed=M_rows * L_total * (in_itemsize + out_itemsize)
        + L_total * pos_row.dtype.itemsize,
        transcendentals=0,
    )

    out2 = pl.pallas_call(
        _add_pos_kernel,
        out_shape=jax.ShapeDtypeStruct((M_rows, L_total), out_dtype),
        grid_spec=pltpu.PrefetchScalarGridSpec(
            num_scalar_prefetch=0,
            grid=grid,
            in_specs=[
                pl.BlockSpec((tile_m, tile_l), lambda i, j: (i, j)),
                pl.BlockSpec((1, tile_l), lambda i, j: (0, j)),   # VMEM-resident rows
            ],
            out_specs=pl.BlockSpec((tile_m, tile_l), lambda i, j: (i, j)),
        ),
        compiler_params=pltpu.CompilerParams(
            dimension_semantics=("parallel", "parallel"),
            vmem_limit_bytes=32 * 1024 * 1024,        # safe on v5e/v6e/v7x
        ),
        cost_estimate=cost,
    )(x2, pos_row)

    return out2.reshape(B, C, E)


def _reference(x, pos_embedding):
    return x.astype(jnp.promote_types(x.dtype, pos_embedding.dtype)) + pos_embedding


if __name__ == "__main__":
    # Module config: channels=4, embedding_size=16, dropout=0.0
    batch, channels, embedding_size = 2, 4, 16

    key = jax.random.PRNGKey(0)
    kx, kp = jax.random.split(key, 2)

    x = jax.random.normal(kx, (batch, channels, embedding_size), dtype=jnp.float32)
    pos = jax.random.normal(kp, (1, channels, embedding_size), dtype=jnp.float32)

    out = positional_embedding(x, pos)
    out = jax.block_until_ready(out)

    ref = _reference(x, pos)
    assert out.shape == (batch, channels, embedding_size)
    assert out.dtype == ref.dtype
    assert jnp.allclose(out, ref, atol=1e-6, rtol=1e-6), "mismatch vs reference"

    print("KERNEL_OK")
</pallas_src>

<mosaic_0001>
module attributes {stable_mosaic.version = 11 : i64} {
  func.func @_add_pos_kernel(%arg0: i32, %arg1: i32, %arg2: memref<1x128xf32, #tpu.memory_space<vmem>>, %arg3: memref<1x128xf32, #tpu.memory_space<vmem>>, %arg4: memref<1x128xf32, #tpu.memory_space<vmem>>) attributes {dimension_semantics = [#tpu.dimension_semantics<parallel>, #tpu.dimension_semantics<parallel>], iteration_bounds = array<i64: 1, 1>, scalar_prefetch = 0 : i64, scratch_operands = 0 : i64, tpu.core_type = #tpu.core_type<tc>, window_params = [{transform_indices = @transform_0, window_bounds = array<i64: 1, 128>}, {transform_indices = @transform_1, window_bounds = array<i64: 1, 128>}, {transform_indices = @transform_2, window_bounds = array<i64: 1, 128>}]} {
    %c0 = arith.constant 0 : index
    %c0_0 = arith.constant 0 : index
    %0 = vector.load %arg2[%c0, %c0_0] : memref<1x128xf32, #tpu.memory_space<vmem>>, vector<1x128xf32>
    %c0_1 = arith.constant 0 : index
    %c0_2 = arith.constant 0 : index
    %1 = vector.load %arg3[%c0_1, %c0_2] : memref<1x128xf32, #tpu.memory_space<vmem>>, vector<1x128xf32>
    %2 = arith.addf %0, %1 : vector<1x128xf32>
    %c0_3 = arith.constant 0 : index
    %c0_4 = arith.constant 0 : index
    %3 = vector.load %arg4[%c0_3, %c0_4] : memref<1x128xf32, #tpu.memory_space<vmem>>, vector<1x128xf32>
    tpu.vector_store %arg4[%c0_3, %c0_4], %2 {strides = array<i32>} : memref<1x128xf32, #tpu.memory_space<vmem>>, vector<1x128xf32>,
    return
  }
  func.func @transform_0(%arg0: i32, %arg1: i32) -> (i32, i32) {
    %c0_i32 = arith.constant 0 : i32
    return %arg0, %arg1 : i32, i32
  }
  func.func @transform_1(%arg0: i32, %arg1: i32) -> (i32, i32) {
    %c0_i32 = arith.constant 0 : i32
    %c0_i32_0 = arith.constant 0 : i32
    return %c0_i32, %arg1 : i32, i32
  }
  func.func @transform_2(%arg0: i32, %arg1: i32) -> (i32, i32) {
    %c0_i32 = arith.constant 0 : i32
    return %arg0, %arg1 : i32, i32
  }
}

</mosaic_0001>

<llo_original>
// kernel: tpu_custom_call.1
$region0: #{tpu_custom_call.1}
  #allocation0 [shape = 'u32[]', space=smem, size = 0x4, offset = 0x4, fixed_abs, tag = 'smem constant byte address 0x4 - core index']
  #allocation1 [shape = 'u32[144,128]{1,0:T(1,128)}', space=vmem, size = 0x12000, scoped, tag = 'internal scratch']
  %s0 = inlined_call_operand.hbm [shape: f32[1,128], index: 0, kind: input, shape index: {}]
  %s1 = inlined_call_operand.vmem [shape: f32[1,128], index: 1, kind: input, shape index: {}]
  %s2 = inlined_call_operand.hbm [shape: f32[1,128], index: 2, kind: output, shape index: {}]
  %s3 = sld [smem:[#allocation0]]
  $region22: #{tpu_custom_call.1} parent=0
    _
  %s5 = ssub.s32 1, %s3
  %s6 = scalar_select 0, %s5, %s3
  $region1: #{tpu_custom_call.1} parent=0
    #allocation2 [shape = 'u8[512]{0}', space=vmem, size = 0x400, scoped, tag = 'input window, operand 0, single buffered']
    #allocation3 [shape = 's32[1]{0}', space=sflag, size = 0x4, scoped, tag = 'scoped memory for tpu_custom_call.1']
    #allocation4 [shape = 's32[1]{0}', space=sflag, size = 0x4, scoped, tag = 'scoped memory for tpu_custom_call.1']
    #allocation5 [shape = 'u8[512]{0}', space=vmem, size = 0x400, scoped, tag = 'output window, operand 0, single buffered']
    %7 = vsyncpa [#allocation3], 0
    %8 = vsyncpa [#allocation4], 0
    // Predicated region
    $region2: #{tpu_custom_call.1} parent=1 // pred_check
      _
    $region3: #{tpu_custom_call.1} parent=1 // pred_check_branch
      %10 = sbr.rel (0) target = $region5
    $region4: #{tpu_custom_call.1} parent=1 // pred_region
      %s12 = ssub.s32 16, 16
      %13 = vsyncadd [#allocation3], %s12
      %s15 = sshll.u32 [#allocation2], 4
      %s16 = int_to_ptr.vmem [resolvable:$true] %s15
      %18 = dma.hbm_to_vmem [thread:$0]  %s0, 16, %s16, [#allocation3]
    $region5: #{tpu_custom_call.1} parent=1 // pred_fallthru
      _
    // Predicated region
    $region6: #{tpu_custom_call.1} parent=1 // pred_check
      _
    $region7: #{tpu_custom_call.1} parent=1 // pred_check_branch
      %20 = sbr.rel (0) target = $region9
    $region8: #{tpu_custom_call.1} parent=1 // pred_region
      _
    $region9: #{tpu_custom_call.1} parent=1 // pred_fallthru
      _
    // Predicated region
    $region10: #{tpu_custom_call.1} parent=1 // pred_check
      _
    $region11: #{tpu_custom_call.1} parent=1 // pred_check_branch
      %22 = sbr.rel (0) target = $region13
    $region12: #{tpu_custom_call.1} parent=1 // pred_region
      %23 = dma.done [#allocation3], 16
    $region13: #{tpu_custom_call.1} parent=1 // pred_fallthru
      _
    %v24 = vld [vmem:[#allocation2] sm:$0x1]
    %v25 = vld [vmem:[%s1] sm:$0x1]
    %v26 = vadd.f32 %v24, %v25
    %27 = vst [vmem:[#allocation5] sm:$0x1] %v26
    // Predicated region
    $region14: #{tpu_custom_call.1} parent=1 // pred_check
      _
    $region15: #{tpu_custom_call.1} parent=1 // pred_check_branch
      %29 = sbr.rel (0) target = $region17
    $region16: #{tpu_custom_call.1} parent=1 // pred_region
      %s31 = ssub.s32 16, 16
      %32 = vsyncadd [#allocation4], %s31
      %s34 = sshll.u32 [#allocation5], 4
      %s35 = int_to_ptr.vmem [resolvable:$true] %s34
      %37 = dma.vmem_to_hbm [thread:$0]  %s35, 16, %s2, [#allocation4]
    $region17: #{tpu_custom_call.1} parent=1 // pred_fallthru
      _
    // Predicated region
    $region18: #{tpu_custom_call.1} parent=1 // pred_check
      _
    $region19: #{tpu_custom_call.1} parent=1 // pred_check_branch
      %39 = sbr.rel (0) target = $region21
    $region20: #{tpu_custom_call.1} parent=1 // pred_region
      %40 = dma.done [#allocation4], 16
    $region21: #{tpu_custom_call.1} parent=1 // pred_fallthru
      _
    %41 = vsyncpa [#allocation3], 1
    %42 = vsyncpa [#allocation4], 1

</llo_original>
